<compile_context>
chip_gen: v7x
topology: tpu7x:2x2x1
jax: 0.10.0
libtpu: 0.0.40
codegen_flags: <defaults>
</compile_context>

<pallas_src>
import functools

import jax
import jax.numpy as jnp
from jax.experimental import pallas as pl
from jax.experimental.pallas import tpu as pltpu


def _fit(dim, desired):
    """Use the desired tile if it divides the dim, else fall back to full dim."""
    return desired if dim % desired == 0 else dim


# --------------------------- tiled linear (QKV proj) -------------------------


def _linear_kernel(x_ref, w_ref, o_ref, acc_ref):
    k = pl.program_id(2)

    @pl.when(k == 0)
    def _():
        acc_ref[...] = jnp.zeros(acc_ref.shape, acc_ref.dtype)

    acc_ref[...] += jnp.dot(x_ref[...], w_ref[...],
                            preferred_element_type=jnp.float32)

    @pl.when(k == pl.num_programs(2) - 1)
    def _():
        o_ref[...] = acc_ref[...].astype(o_ref.dtype)


def _linear_bias_kernel(x_ref, w_ref, b_ref, o_ref, acc_ref):
    k = pl.program_id(2)

    @pl.when(k == 0)
    def _():
        acc_ref[...] = jnp.zeros(acc_ref.shape, acc_ref.dtype)

    acc_ref[...] += jnp.dot(x_ref[...], w_ref[...],
                            preferred_element_type=jnp.float32)

    @pl.when(k == pl.num_programs(2) - 1)
    def _():
        # bias added once, on the last K step only
        o_ref[...] = (acc_ref[...] +
                      b_ref[...].astype(jnp.float32)).astype(o_ref.dtype)


def pallas_linear(x, w, b=None, *, tm=256, tn=512, tk=512):
    """x: [M, K], w: [K, N], b: [N] or None -> [M, N] (tiled, pipelined)."""
    M, K = x.shape
    _, N = w.shape
    tm, tn, tk = _fit(M, tm), _fit(N, tn), _fit(K, tk)
    grid = (M // tm, N // tn, K // tk)

    in_specs = [
        pl.BlockSpec((tm, tk), lambda i, j, k: (i, k)),
        pl.BlockSpec((tk, tn), lambda i, j, k: (k, j)),
    ]
    args = [x, w]
    if b is not None:
        in_specs.append(pl.BlockSpec((1, tn), lambda i, j, k: (0, j)))
        args.append(b.reshape(1, N))
        kernel = _linear_bias_kernel
    else:
        kernel = _linear_kernel

    return pl.pallas_call(
        kernel,
        out_shape=jax.ShapeDtypeStruct((M, N), x.dtype),
        grid=grid,
        in_specs=in_specs,
        out_specs=pl.BlockSpec((tm, tn), lambda i, j, k: (i, j)),
        scratch_shapes=[pltpu.VMEM((tm, tn), jnp.float32)],
        compiler_params=pltpu.CompilerParams(
            dimension_semantics=("parallel", "parallel", "arbitrary")),
    )(*args)


# ------------------------- flash attention (causal, GQA) ---------------------


def _flash_attn_kernel(q_ref, k_ref, v_ref, o_ref, m_ref, l_ref, acc_ref, *,
                       scale, tq, tkk):
    qi = pl.program_id(2)
    ki = pl.program_id(3)
    # Last kv block that intersects the causal region of this q block.
    last_k = ((qi + 1) * tq - 1) // tkk

    @pl.when(ki == 0)
    def _():
        m_ref[...] = jnp.full(m_ref.shape, -jnp.inf, m_ref.dtype)
        l_ref[...] = jnp.zeros(l_ref.shape, l_ref.dtype)
        acc_ref[...] = jnp.zeros(acc_ref.shape, acc_ref.dtype)

    @pl.when(ki <= last_k)                       # skip fully-masked kv blocks
    def _():
        q = q_ref[...]                           # (tq, D), native dtype
        k = k_ref[...]                           # (tk, D)
        s = jax.lax.dot_general(
            q, k, (((1,), (1,)), ((), ())),
            preferred_element_type=jnp.float32) * scale        # (tq, tk) f32

        row = qi * tq + jax.lax.broadcasted_iota(jnp.int32, (tq, tkk), 0)
        col = ki * tkk + jax.lax.broadcasted_iota(jnp.int32, (tq, tkk), 1)
        s = jnp.where(col <= row, s, -1e30)                    # causal mask

        m_prev = m_ref[...]
        m_new = jnp.maximum(m_prev, jnp.max(s, axis=-1, keepdims=True))
        alpha = jnp.exp(m_prev - m_new)
        p = jnp.exp(s - m_new)
        l_ref[...] = alpha * l_ref[...] + jnp.sum(p, axis=-1, keepdims=True)
        acc_ref[...] = alpha * acc_ref[...] + jnp.dot(
            p.astype(v_ref.dtype), v_ref[...],
            preferred_element_type=jnp.float32)
        m_ref[...] = m_new

    @pl.when(ki == last_k)
    def _():
        l = l_ref[...]
        inv = pl.reciprocal(l, approx=True)      # EUP slot
        inv = inv * (2.0 - l * inv)              # one Newton step -> ~f32 exact
        o_ref[...] = (acc_ref[...] * inv).astype(o_ref.dtype)


def pallas_flash_attention(q, k, v, scale, *, tq=256, tkk=256):
    """q: [B, NH, S, D]; k, v: [B, NKV, S, D] -> [B, NH, S, D] (causal, GQA)."""
    B, NH, S, D = q.shape
    NKV = k.shape[1]
    group = NH // NKV
    tq, tkk = _fit(S, tq), _fit(S, tkk)
    grid = (B, NH, S // tq, S // tkk)
    kernel = functools.partial(_flash_attn_kernel, scale=scale, tq=tq, tkk=tkk)

    return pl.pallas_call(
        kernel,
        out_shape=jax.ShapeDtypeStruct((B, NH, S, D), q.dtype),
        grid=grid,
        in_specs=[
            pl.BlockSpec((None, None, tq, D),
                         lambda b, h, qi, ki: (b, h, qi, 0)),
            pl.BlockSpec((None, None, tkk, D),
                         lambda b, h, qi, ki: (b, h // group, ki, 0)),
            pl.BlockSpec((None, None, tkk, D),
                         lambda b, h, qi, ki: (b, h // group, ki, 0)),
        ],
        out_specs=pl.BlockSpec((None, None, tq, D),
                               lambda b, h, qi, ki: (b, h, qi, 0)),
        scratch_shapes=[pltpu.VMEM((tq, 1), jnp.float32),    # running max
                        pltpu.VMEM((tq, 1), jnp.float32),    # running sum
                        pltpu.VMEM((tq, D), jnp.float32)],   # accumulator
        compiler_params=pltpu.CompilerParams(
            dimension_semantics=("parallel", "parallel", "parallel",
                                 "arbitrary")),
    )(q, k, v)


# ---------------- dense projection consuming [B, NH, S, D] directly ----------


def _dense_heads_kernel(ctx_ref, w_ref, o_ref, acc_ref):
    h = pl.program_id(3)

    @pl.when(h == 0)
    def _():
        acc_ref[...] = jnp.zeros(acc_ref.shape, acc_ref.dtype)

    acc_ref[...] += jnp.dot(ctx_ref[...], w_ref[...],
                            preferred_element_type=jnp.float32)

    @pl.when(h == pl.num_programs(3) - 1)
    def _():
        o_ref[...] = acc_ref[...].astype(o_ref.dtype)


def _dense_heads_bias_kernel(ctx_ref, w_ref, b_ref, o_ref, acc_ref):
    h = pl.program_id(3)

    @pl.when(h == 0)
    def _():
        acc_ref[...] = jnp.zeros(acc_ref.shape, acc_ref.dtype)

    acc_ref[...] += jnp.dot(ctx_ref[...], w_ref[...],
                            preferred_element_type=jnp.float32)

    @pl.when(h == pl.num_programs(3) - 1)
    def _():
        o_ref[...] = (acc_ref[...] +
                      b_ref[...].astype(jnp.float32)).astype(o_ref.dtype)


def pallas_dense_from_heads(ctx, w3, b=None, *, tms=256, tn=512):
    """ctx: [B, NH, S, D], w3: [NH, D, N] -> [B, S, N].

    Contracts over (heads, head_dim) with the head axis as the innermost
    (reduction) grid dimension, so no transpose of ctx back to [B*S, NH*D]
    is needed."""
    B, NH, S, D = ctx.shape
    N = w3.shape[2]
    tms, tn = _fit(S, tms), _fit(N, tn)
    grid = (B, S // tms, N // tn, NH)

    in_specs = [
        pl.BlockSpec((None, None, tms, D), lambda b, i, j, h: (b, h, i, 0)),
        pl.BlockSpec((None, D, tn), lambda b, i, j, h: (h, 0, j)),
    ]
    args = [ctx, w3]
    if b is not None:
        in_specs.append(pl.BlockSpec((1, tn), lambda b, i, j, h: (0, j)))
        args.append(b.reshape(1, N))
        kernel = _dense_heads_bias_kernel
    else:
        kernel = _dense_heads_kernel

    return pl.pallas_call(
        kernel,
        out_shape=jax.ShapeDtypeStruct((B, S, N), ctx.dtype),
        grid=grid,
        in_specs=in_specs,
        out_specs=pl.BlockSpec((None, tms, tn), lambda b, i, j, h: (b, i, j)),
        scratch_shapes=[pltpu.VMEM((tms, tn), jnp.float32)],
        compiler_params=pltpu.CompilerParams(
            dimension_semantics=("parallel", "parallel", "parallel",
                                 "arbitrary")),
    )(*args)


# --------------------------------- RoPE glue ---------------------------------


def apply_rotary_gptj(x, positions, rotary_dim, base):
    """vLLM RotaryEmbedding with is_neox_style=False (interleaved pairs),
    partial rotary (only x[..., :rotary_dim] rotated).
    x: [B, S, heads, head_dim]; positions: [B, S]."""
    inv_freq = 1.0 / (base ** (jnp.arange(0, rotary_dim, 2, dtype=jnp.float32)
                               / rotary_dim))                        # (rd//2,)
    freqs = positions[..., None].astype(jnp.float32) * inv_freq      # (B,S,rd//2)
    cos = jnp.cos(freqs)[:, :, None, :]                              # (B,S,1,rd//2)
    sin = jnp.sin(freqs)[:, :, None, :]

    x_rot, x_pass = x[..., :rotary_dim], x[..., rotary_dim:]
    x1 = x_rot[..., 0::2]
    x2 = x_rot[..., 1::2]
    o1 = x1 * cos - x2 * sin
    o2 = x2 * cos + x1 * sin
    out_rot = jnp.stack([o1, o2], axis=-1).reshape(x_rot.shape)
    return jnp.concatenate([out_rot, x_pass], axis=-1).astype(x.dtype)


# ----------------------------------- module ----------------------------------


class GLMAttentionPallas:
    def __init__(self, key, hidden_size, num_heads, num_kv_heads,
                 add_qkv_bias=True, add_bias_linear=False, rope_ratio=1.0):
        self.hidden_size = hidden_size
        self.num_heads = num_heads
        self.num_kv_heads = num_kv_heads
        self.head_dim = hidden_size // num_heads
        self.q_size = num_heads * self.head_dim
        self.kv_size = num_kv_heads * self.head_dim
        self.scaling = self.head_dim ** -0.5
        self.rotary_dim = self.head_dim // 2
        self.rope_base = 10000.0 * rope_ratio

        k1, k2, k3, k4 = jax.random.split(key, 4)
        qkv_out = self.q_size + 2 * self.kv_size
        self.w_qkv = 0.02 * jax.random.normal(k1, (hidden_size, qkv_out), jnp.float32)
        self.b_qkv = (0.01 * jax.random.normal(k2, (qkv_out,), jnp.float32)
                      if add_qkv_bias or add_bias_linear else None)
        self.w_dense = 0.02 * jax.random.normal(k3, (self.q_size, hidden_size),
                                                jnp.float32)
        # [NH, D, H] view for the head-contracting output projection kernel.
        self.w_dense3 = self.w_dense.reshape(num_heads, self.head_dim, hidden_size)
        self.b_dense = (0.01 * jax.random.normal(k4, (hidden_size,), jnp.float32)
                        if add_bias_linear else None)

    def __call__(self, hidden_states, position_ids):
        B, S, H = hidden_states.shape
        NH, NKV, D = self.num_heads, self.num_kv_heads, self.head_dim
        x = hidden_states.reshape(B * S, H)

        # QKV projection (tiled Pallas matmul, bias on last K step).
        qkv = pallas_linear(x, self.w_qkv, self.b_qkv)          # (B*S, q+2kv)
        qkv4 = qkv.reshape(B, S, NH + 2 * NKV, D)
        q4 = qkv4[:, :, :NH]
        k4 = qkv4[:, :, NH:NH + NKV]
        v4 = qkv4[:, :, NH + NKV:]

        # Partial rotary (GPT-J interleaved); elementwise — XLA fuses it with the
        # single layout transpose below, so no extra HBM pass over q/k.
        q4 = apply_rotary_gptj(q4, position_ids, self.rotary_dim, self.rope_base)
        k4 = apply_rotary_gptj(k4, position_ids, self.rotary_dim, self.rope_base)

        qh = jnp.transpose(q4, (0, 2, 1, 3))                    # (B, NH,  S, D)
        kh = jnp.transpose(k4, (0, 2, 1, 3))                    # (B, NKV, S, D)
        vh = jnp.transpose(v4, (0, 2, 1, 3))

        # Flash attention (causal, GQA) — stays in [B, NH, S, D].
        ctx = pallas_flash_attention(qh, kh, vh, self.scaling)  # (B, NH, S, D)

        # Output projection consumes head-major ctx directly (no transpose back).
        out = pallas_dense_from_heads(ctx, self.w_dense3, self.b_dense)
        return out                                              # (B, S, H)


# ------------------------------ reference (JAX) -------------------------------


def reference_forward(mod, hidden_states, position_ids):
    B, S, H = hidden_states.shape
    x = hidden_states.reshape(B * S, H)
    qkv = x @ mod.w_qkv + (mod.b_qkv if mod.b_qkv is not None else 0.0)
    q = qkv[:, :mod.q_size].reshape(B, S, mod.num_heads, mod.head_dim)
    k = qkv[:, mod.q_size:mod.q_size + mod.kv_size].reshape(
        B, S, mod.num_kv_heads, mod.head_dim)
    v = qkv[:, mod.q_size + mod.kv_size:].reshape(
        B, S, mod.num_kv_heads, mod.head_dim)
    q = apply_rotary_gptj(q, position_ids, mod.rotary_dim, mod.rope_base)
    k = apply_rotary_gptj(k, position_ids, mod.rotary_dim, mod.rope_base)
    group = mod.num_heads // mod.num_kv_heads
    k = jnp.repeat(k, group, axis=2)
    v = jnp.repeat(v, group, axis=2)
    qh = jnp.transpose(q, (0, 2, 1, 3))
    kh = jnp.transpose(k, (0, 2, 1, 3))
    vh = jnp.transpose(v, (0, 2, 1, 3))
    s = jnp.einsum("bhqd,bhkd->bhqk", qh, kh) * mod.scaling
    mask = jnp.tril(jnp.ones((S, S), bool))
    s = jnp.where(mask, s, -1e30)
    p = jax.nn.softmax(s, axis=-1)
    ctx = jnp.einsum("bhqk,bhkd->bhqd", p, vh)
    ctx = jnp.transpose(ctx, (0, 2, 1, 3)).reshape(B * S, mod.q_size)
    out = ctx @ mod.w_dense + (mod.b_dense if mod.b_dense is not None else 0.0)
    return out.reshape(B, S, H)


# ------------------------------------ main ------------------------------------

if __name__ == "__main__":
    # Small ChatGLM-like config: hidden=32, 4 q heads (head_dim=8),
    # multi_query_attention with 2 kv groups, add_qkv_bias=True, no dense bias.
    B, S, HIDDEN = 2, 8, 32
    NUM_HEADS, NUM_KV_HEADS = 4, 2

    key = jax.random.PRNGKey(0)
    k_param, k_x = jax.random.split(key)

    mod = GLMAttentionPallas(k_param, HIDDEN, NUM_HEADS, NUM_KV_HEADS,
                             add_qkv_bias=True, add_bias_linear=False)

    hidden_states = jax.random.normal(k_x, (B, S, HIDDEN), jnp.float32)
    position_ids = jnp.broadcast_to(jnp.arange(S, dtype=jnp.int32), (B, S))

    out = mod(hidden_states, position_ids)
    out = jax.block_until_ready(out)

    ref = reference_forward(mod, hidden_states, position_ids)
    assert out.shape == (B, S, HIDDEN)
    assert jnp.allclose(out, ref, atol=1e-4, rtol=1e-4), "mismatch vs reference"

    print("KERNEL_OK")
</pallas_src>

<mosaic_0001>
module attributes {stable_mosaic.version = 11 : i64} {
  func.func @_linear_bias_kernel(%arg0: i32, %arg1: i32, %arg2: i32, %arg3: memref<16x32xf32, #tpu.memory_space<vmem>>, %arg4: memref<32x64xf32, #tpu.memory_space<vmem>>, %arg5: memref<1x64xf32, #tpu.memory_space<vmem>>, %arg6: memref<16x64xf32, #tpu.memory_space<vmem>>, %arg7: memref<16x64xf32, #tpu.memory_space<vmem>>) attributes {dimension_semantics = [#tpu.dimension_semantics<parallel>, #tpu.dimension_semantics<parallel>, #tpu.dimension_semantics<arbitrary>], iteration_bounds = array<i64: 1, 1, 1>, scalar_prefetch = 0 : i64, scratch_operands = 1 : i64, tpu.core_type = #tpu.core_type<tc>, window_params = [{transform_indices = @transform_0, window_bounds = array<i64: 16, 32>}, {transform_indices = @transform_1, window_bounds = array<i64: 32, 64>}, {transform_indices = @transform_2, window_bounds = array<i64: 1, 64>}, {transform_indices = @transform_3, window_bounds = array<i64: 16, 64>}]} {
    %c0_i32 = arith.constant 0 : i32
    %0 = arith.cmpi eq, %arg2, %c0_i32 : i32
    %1 = arith.extui %0 : i1 to i32
    %c0_i32_0 = arith.constant 0 : i32
    %2 = arith.cmpi ne, %1, %c0_i32_0 : i32
    scf.if %2 {
      %cst_10 = arith.constant 0.000000e+00 : f32
      %12 = vector.broadcast %cst_10 : f32 to vector<16x64xf32>
      %c0_11 = arith.constant 0 : index
      %c0_12 = arith.constant 0 : index
      %13 = vector.load %arg7[%c0_11, %c0_12] : memref<16x64xf32, #tpu.memory_space<vmem>>, vector<16x64xf32>
      tpu.vector_store %arg7[%c0_11, %c0_12], %12 {strides = array<i32>} : memref<16x64xf32, #tpu.memory_space<vmem>>, vector<16x64xf32>,
    } else {
    }
    %c0 = arith.constant 0 : index
    %c0_1 = arith.constant 0 : index
    %3 = vector.load %arg7[%c0, %c0_1] : memref<16x64xf32, #tpu.memory_space<vmem>>, vector<16x64xf32>
    %c0_2 = arith.constant 0 : index
    %c0_3 = arith.constant 0 : index
    %4 = vector.load %arg3[%c0_2, %c0_3] : memref<16x32xf32, #tpu.memory_space<vmem>>, vector<16x32xf32>
    %c0_4 = arith.constant 0 : index
    %c0_5 = arith.constant 0 : index
    %5 = vector.load %arg4[%c0_4, %c0_5] : memref<32x64xf32, #tpu.memory_space<vmem>>, vector<32x64xf32>
    %cst = arith.constant dense<0.000000e+00> : vector<16x64xf32>
    %6 = tpu.matmul %4, %5, %cst {dimension_numbers = #tpu.dot_dimension_numbers<[1], [0], [0], [1], [0, 0, 1, 1], [], []>} : vector<16x32xf32>, vector<32x64xf32>, vector<16x64xf32> -> vector<16x64xf32>
    %7 = arith.addf %3, %6 : vector<16x64xf32>
    %c0_6 = arith.constant 0 : index
    %c0_7 = arith.constant 0 : index
    %8 = vector.load %arg7[%c0_6, %c0_7] : memref<16x64xf32, #tpu.memory_space<vmem>>, vector<16x64xf32>
    tpu.vector_store %arg7[%c0_6, %c0_7], %7 {strides = array<i32>} : memref<16x64xf32, #tpu.memory_space<vmem>>, vector<16x64xf32>,
    %c0_i32_8 = arith.constant 0 : i32
    %9 = arith.cmpi eq, %arg2, %c0_i32_8 : i32
    %10 = arith.extui %9 : i1 to i32
    %c0_i32_9 = arith.constant 0 : i32
    %11 = arith.cmpi ne, %10, %c0_i32_9 : i32
    scf.if %11 {
      %c0_10 = arith.constant 0 : index
      %c0_11 = arith.constant 0 : index
      %12 = vector.load %arg7[%c0_10, %c0_11] : memref<16x64xf32, #tpu.memory_space<vmem>>, vector<16x64xf32>
      %c0_12 = arith.constant 0 : index
      %c0_13 = arith.constant 0 : index
      %13 = vector.load %arg5[%c0_12, %c0_13] : memref<1x64xf32, #tpu.memory_space<vmem>>, vector<1x64xf32>
      %14 = vector.broadcast %13 : vector<1x64xf32> to vector<16x64xf32>
      %15 = arith.addf %12, %14 : vector<16x64xf32>
      %c0_14 = arith.constant 0 : index
      %c0_15 = arith.constant 0 : index
      %16 = vector.load %arg6[%c0_14, %c0_15] : memref<16x64xf32, #tpu.memory_space<vmem>>, vector<16x64xf32>
      tpu.vector_store %arg6[%c0_14, %c0_15], %15 {strides = array<i32>} : memref<16x64xf32, #tpu.memory_space<vmem>>, vector<16x64xf32>,
    } else {
    }
    return
  }
  func.func @transform_0(%arg0: i32, %arg1: i32, %arg2: i32) -> (i32, i32) {
    %c0_i32 = arith.constant 0 : i32
    return %arg0, %arg2 : i32, i32
  }
  func.func @transform_1(%arg0: i32, %arg1: i32, %arg2: i32) -> (i32, i32) {
    %c0_i32 = arith.constant 0 : i32
    return %arg2, %arg1 : i32, i32
  }
  func.func @transform_2(%arg0: i32, %arg1: i32, %arg2: i32) -> (i32, i32) {
    %c0_i32 = arith.constant 0 : i32
    %c0_i32_0 = arith.constant 0 : i32
    return %c0_i32, %arg1 : i32, i32
  }
  func.func @transform_3(%arg0: i32, %arg1: i32, %arg2: i32) -> (i32, i32) {
    %c0_i32 = arith.constant 0 : i32
    return %arg0, %arg1 : i32, i32
  }
}

</mosaic_0001>

<llo_original>
// kernel: tpu_custom_call.1
$region0: #{tpu_custom_call.1}
  #allocation0 [shape = 'u32[]', space=smem, size = 0x4, offset = 0x4, fixed_abs, tag = 'smem constant byte address 0x4 - core index']
  #allocation1 [shape = 'u32[144,128]{1,0:T(1,128)}', space=vmem, size = 0x12000, scoped, tag = 'internal scratch']
  #allocation2 [shape = 'f32[16,64]{1,0:T(8,128)}', space=vmem, size = 0x2000, scoped, tag = 'scratch operand']
  %s0 = inlined_call_operand.hbm [shape: f32[16,32], index: 0, kind: input, shape index: {}]
  %s1 = inlined_call_operand.hbm [shape: f32[32,64], index: 1, kind: input, shape index: {}]
  %s2 = inlined_call_operand.vmem [shape: f32[1,64], index: 2, kind: input, shape index: {}]
  %s3 = inlined_call_operand.hbm [shape: f32[16,64], index: 3, kind: output, shape index: {}]
  %s4 = sld [smem:[#allocation0]]
  $region38: #{tpu_custom_call.1} parent=0
    _
  %s6 = ssub.s32 1, %s4
  %s7 = scalar_select 0, %s6, %s4
  $region1: #{tpu_custom_call.1} parent=0
    #allocation3 [shape = 'u8[8192]{0}', space=vmem, size = 0x2000, scoped, tag = 'input window, operand 0, single buffered']
    #allocation4 [shape = 's32[1]{0}', space=sflag, size = 0x4, scoped, tag = 'scoped memory for tpu_custom_call.1']
    #allocation5 [shape = 's32[1]{0}', space=sflag, size = 0x4, scoped, tag = 'scoped memory for tpu_custom_call.1']
    #allocation6 [shape = 'u8[16384]{0}', space=vmem, size = 0x4000, scoped, tag = 'input window, operand 1, single buffered']
    #allocation7 [shape = 's32[1]{0}', space=sflag, size = 0x4, scoped, tag = 'scoped memory for tpu_custom_call.1']
    #allocation8 [shape = 'u8[8192]{0}', space=vmem, size = 0x2000, scoped, tag = 'output window, operand 0, single buffered']
    %8 = vsyncpa [#allocation4], 0
    %9 = vsyncpa [#allocation7], 0
    %10 = vsyncpa [#allocation5], 0
    // Predicated region
    $region2: #{tpu_custom_call.1} parent=1 // pred_check
      _
    $region3: #{tpu_custom_call.1} parent=1 // pred_check_branch
      %12 = sbr.rel (0) target = $region5
    $region4: #{tpu_custom_call.1} parent=1 // pred_region
      %s14 = ssub.s32 256, 256
      %15 = vsyncadd [#allocation4], %s14
      %s16 = sshll.u32 [#allocation3], 4
      %s17 = int_to_ptr.vmem [resolvable:$true] %s16
      %22 = dma.hbm_to_vmem [thread:$0]  %s0, 256, %s17, [#allocation4], 128, 128, 8
    $region5: #{tpu_custom_call.1} parent=1 // pred_fallthru
      _
    // Predicated region
    $region6: #{tpu_custom_call.1} parent=1 // pred_check
      _
    $region7: #{tpu_custom_call.1} parent=1 // pred_check_branch
      %24 = sbr.rel (0) target = $region9
    $region8: #{tpu_custom_call.1} parent=1 // pred_region
      %s26 = ssub.s32 512, 512
      %27 = vsyncadd [#allocation7], %s26
      %s28 = sshll.u32 [#allocation6], 4
      %s29 = int_to_ptr.vmem [resolvable:$true] %s28
      %34 = dma.hbm_to_vmem [thread:$0]  %s1, 512, %s29, [#allocation7], 128, 128, 8
    $region9: #{tpu_custom_call.1} parent=1 // pred_fallthru
      _
    // Predicated region
    $region10: #{tpu_custom_call.1} parent=1 // pred_check
      _
    $region11: #{tpu_custom_call.1} parent=1 // pred_check_branch
      %36 = sbr.rel (0) target = $region13
    $region12: #{tpu_custom_call.1} parent=1 // pred_region
      _
    $region13: #{tpu_custom_call.1} parent=1 // pred_fallthru
      _
    // Predicated region
    $region14: #{tpu_custom_call.1} parent=1 // pred_check
      _
    $region15: #{tpu_custom_call.1} parent=1 // pred_check_branch
      %38 = sbr.rel (0) target = $region17
    $region16: #{tpu_custom_call.1} parent=1 // pred_region
      %39 = dma.done [#allocation4], 256
    $region17: #{tpu_custom_call.1} parent=1 // pred_fallthru
      _
    // Predicated region
    $region18: #{tpu_custom_call.1} parent=1 // pred_check
      _
    $region19: #{tpu_custom_call.1} parent=1 // pred_check_branch
      %41 = sbr.rel (0) target = $region21
    $region20: #{tpu_custom_call.1} parent=1 // pred_region
      %42 = dma.done [#allocation7], 512
    $region21: #{tpu_custom_call.1} parent=1 // pred_fallthru
      _
    %p43 = scmp.eq.s32.totalorder 0, 0
    // Predicated region
    $region22: #{tpu_custom_call.1} parent=1 // pred_check
      %p44 = pneg %p43
    $region23: #{tpu_custom_call.1} parent=1 // pred_check_branch
      %46 = sbr.rel (%p44) target = $region25
    $region24: #{tpu_custom_call.1} parent=1 // pred_region
      %vm47 = vcmask 523264
      %48 = vst.msk [vmem:[#allocation2] sm:$0xff] %vm47, 0.0
      %49 = vst.msk [vmem:[#allocation2 + $0x8] sm:$0xff] %vm47, 0.0
    $region25: #{tpu_custom_call.1} parent=1 // pred_fallthru
      _
    %v50 = vld [vmem:[#allocation2] sm:$0xff]
    %v51 = vld [vmem:[#allocation2 + $0x8] sm:$0xff]
    %v52 = vld [vmem:[#allocation3] sm:$0xff]
    %v53 = vld [vmem:[#allocation3 + $0x8] sm:$0xff]
    %v54 = vld [vmem:[#allocation6] sm:$0xff]
    %v55 = vld [vmem:[#allocation6 + $0x8] sm:$0xff]
    %v56 = vld [vmem:[#allocation6 + $0x10] sm:$0xff]
    %v57 = vld [vmem:[#allocation6 + $0x18] sm:$0xff]
    %vm58 = vcmask 261120
    %v60 = vsel %vm58, %v52, 0
    %v63 = vsel %vm58, %v53, 0
    %65 = vmatprep.subr.mxu0 0.0
    %66 = vmatpush1.msra.mxu0 %v54
    %67 = vmatprep.subr.mxu0 0.0
    %68 = vmatpush1.msra.mxu0 %v55
    %69 = vmatprep.subr.mxu0 0.0
    %70 = vmatpush1.msra.mxu0 %v56
    %71 = vmatprep.subr.mxu0 0.0
    %72 = vmatpush1.msra.mxu0 %v57
    %73 = vmatprep.subr.mxu0 0.0
    %74 = vmatpush1.msra.mxu0 0.0
    %75 = vmatprep.subr.mxu0 0.0
    %76 = vmatpush1.msra.mxu0 0.0
    %77 = vmatprep.subr.mxu0 0.0
    %78 = vmatpush1.msra.mxu0 0.0
    %79 = vmatprep.subr.mxu0 0.0
    %80 = vmatpush1.msra.mxu0 0.0
    %81 = vmatprep.subr.mxu0 0.0
    %82 = vmatpush1.msra.mxu0 0.0
    %83 = vmatprep.subr.mxu0 0.0
    %84 = vmatpush1.msra.mxu0 0.0
    %85 = vmatprep.subr.mxu0 0.0
    %86 = vmatpush1.msra.mxu0 0.0
    %87 = vmatprep.subr.mxu0 0.0
    %88 = vmatpush1.msra.mxu0 0.0
    %89 = vmatprep.subr.mxu0 0.0
    %90 = vmatpush1.msra.mxu0 0.0
    %91 = vmatprep.subr.mxu0 0.0
    %92 = vmatpush1.msra.mxu0 0.0
    %93 = vmatprep.subr.mxu0 0.0
    %94 = vmatpush1.msra.mxu0 0.0
    %95 = vmatprep.subr.mxu0 0.0
    %96 = vmatpush1.msra.mxu0 0.0
    %97 = vmatprep.subr.mxu0 0.0
    %98 = vmatpush1.msra.mxu0 0.0
    %99 = vmatprep.subr.mxu0 0.0
    %100 = vmatpush1.msra.mxu0 0.0
    %101 = vmatprep.subr.mxu0 0.0
    %102 = vmatpush1.msra.mxu0 0.0
    %103 = vmatprep.subr.mxu0 0.0
    %104 = vmatpush1.msra.mxu0 0.0
    %105 = vmatprep.subr.mxu0 0.0
    %106 = vmatpush1.msra.mxu0 0.0
    %107 = vmatprep.subr.mxu0 0.0
    %108 = vmatpush1.msra.mxu0 0.0
    %109 = vmatprep.subr.mxu0 0.0
    %110 = vmatpush1.msra.mxu0 0.0
    %111 = vmatprep.subr.mxu0 0.0
    %112 = vmatpush1.msra.mxu0 0.0
    %113 = vmatprep.subr.mxu0 0.0
    %114 = vmatpush1.msra.mxu0 0.0
    %115 = vmatprep.subr.mxu0 0.0
    %116 = vmatpush1.msra.mxu0 0.0
    %117 = vmatprep.subr.mxu0 0.0
    %118 = vmatpush1.msra.mxu0 0.0
    %119 = vmatprep.subr.mxu0 0.0
    %120 = vmatpush1.msra.mxu0 0.0
    %121 = vmatprep.subr.mxu0 0.0
    %122 = vmatpush1.msra.mxu0 0.0
    %123 = vmatprep.subr.mxu0 0.0
    %124 = vmatpush1.msra.mxu0 0.0
    %125 = vmatprep.subr.mxu0 0.0
    %126 = vmatpush1.msra.mxu0 0.0
    %127 = vmatprep.subr.mxu0 0.0
    %128 = vmatpush1.msra.mxu0 0.0
    %129 = vmatprep.mubr.f32.mxu0 0.0
    %130 = vmatmul.mubr.f32.gmra.mrb[0].mxu0 %v60
    %v131 = vpop.f32.mrb[0].mxu0
    %v132 = vadd.f32 0.0, %v131
    %v133 = vpop.f32.mrb[0].mxu0
    %134 = vmatprep.mubr.f32.mxu0 0.0
    %135 = vmatmul.mubr.f32.gmra.mrb[0].mxu0 %v63
    %v136 = vpop.f32.mrb[0].mxu0
    %v137 = vadd.f32 0.0, %v136
    %v138 = vpop.f32.mrb[0].mxu0
    %139 = vdwg.mxu0
    %v140 = vadd.f32 %v50, %v132
    %v141 = vadd.f32 %v51, %v137
    %vm142 = vcmask 523264
    %143 = vst.msk [vmem:[#allocation2] sm:$0xff] %vm142, %v140
    %144 = vst.msk [vmem:[#allocation2 + $0x8] sm:$0xff] %vm142, %v141
    // Predicated region
    $region26: #{tpu_custom_call.1} parent=1 // pred_check
      %p145 = pneg %p43
    $region27: #{tpu_custom_call.1} parent=1 // pred_check_branch
      %147 = sbr.rel (%p145) target = $region29
    $region28: #{tpu_custom_call.1} parent=1 // pred_region
      %v148 = vld [vmem:[#allocation2] sm:$0xff]
      %v149 = vld [vmem:[#allocation2 + $0x8] sm:$0xff]
      %v150 = vld [vmem:[%s2] sm:$0x1]
      %v152 = vlaneseq
      %v153 = vshrl.u32 %v152, 7
      %v154 = vsub.s32 0, %v153
      %v155 = vrot.slane %v150, %v154
      %v157 = vadd.f32 %v148, %v155
      %v158 = vadd.f32 %v149, %v155
      %159 = vst.msk [vmem:[#allocation8] sm:$0xff] %vm142, %v157
      %160 = vst.msk [vmem:[#allocation8 + $0x8] sm:$0xff] %vm142, %v158
    $region29: #{tpu_custom_call.1} parent=1 // pred_fallthru
      _
    // Predicated region
    $region30: #{tpu_custom_call.1} parent=1 // pred_check
      _
    $region31: #{tpu_custom_call.1} parent=1 // pred_check_branch
      %162 = sbr.rel (0) target = $region33
    $region32: #{tpu_custom_call.1} parent=1 // pred_region
      %s164 = ssub.s32 256, 256
      %165 = vsyncadd [#allocation5], %s164
      %s166 = sshll.u32 [#allocation8], 4
      %s167 = int_to_ptr.vmem [resolvable:$true] %s166
      %172 = dma.vmem_to_hbm [thread:$0]  %s167, 256, %s3, [#allocation5], 128, 128, 8
    $region33: #{tpu_custom_call.1} parent=1 // pred_fallthru
      _
    // Predicated region
    $region34: #{tpu_custom_call.1} parent=1 // pred_check
      _
    $region35: #{tpu_custom_call.1} parent=1 // pred_check_branch
      %174 = sbr.rel (0) target = $region37
    $region36: #{tpu_custom_call.1} parent=1 // pred_region
      %175 = dma.done [#allocation5], 256
    $region37: #{tpu_custom_call.1} parent=1 // pred_fallthru
      _
    %176 = vsyncpa [#allocation4], 1
    %177 = vsyncpa [#allocation7], 1
    %178 = vsyncpa [#allocation5], 1

</llo_original>
